<compile_context>
chip_gen: v5e
topology: v5e:2x2
jax: 0.10.0
libtpu: 0.0.40
codegen_flags: <defaults>
</compile_context>

<pallas_src>
import functools

import jax
import jax.numpy as jnp
from jax.experimental import pallas as pl
from jax.experimental.pallas import tpu as pltpu


def _gelu_exact(x):
    # PyTorch nn.GELU() default: exact erf-based GELU (f32).
    return x * 0.5 * (1.0 + jax.lax.erf(x * (1.0 / jnp.sqrt(2.0).astype(x.dtype))))


def _round_up(n: int, m: int) -> int:
    return ((n + m - 1) // m) * m


def _scalar_conditioner_kernel(scalar_ref, slab_ref, out_ref, *,
                               dim, cond_dim, col_w2, row_consts):
    # Static, aligned slices of the packed weight/constant slab.
    w1 = slab_ref[0:dim, 0:dim]                                  # (D, D)
    w2 = slab_ref[0:dim, col_w2:col_w2 + cond_dim]               # (D, C), 128-lane aligned
    omega = slab_ref[row_consts:row_consts + 1, 0:dim]           # (1, D)
    phase = slab_ref[row_consts + 1:row_consts + 2, 0:dim]       # (1, D)
    b1 = slab_ref[row_consts + 2:row_consts + 3, 0:dim]          # (1, D)
    b2 = slab_ref[row_consts + 3:row_consts + 4, 0:cond_dim]     # (1, C)

    # Sincos embed as a single phase-shifted sin: sin(x + pi/2) == cos(x).
    emb = jnp.sin(scalar_ref[...] * omega + phase)               # (TILE_B, D)

    # MLP: Linear(D, D) -> GELU -> Linear(D, C) -> GELU (f32 MXU accumulation).
    h = jnp.dot(emb, w1, preferred_element_type=jnp.float32) + b1
    h = _gelu_exact(h)
    y = jnp.dot(h, w2, preferred_element_type=jnp.float32) + b2
    out_ref[...] = _gelu_exact(y).astype(out_ref.dtype)


def make_params(dim: int, cond_dim: int | None = None, seed: int = 0):
    cond_dim = cond_dim or dim * 4
    assert dim % 2 == 0, "dim must be even for ndim=1 sincos embed (no padding path)"

    # Sincos frequencies (kappamodules ContinuousSincosEmbed, ndim=1, no padding).
    max_wavelength = 10000.0
    omega_half = 1.0 / (max_wavelength ** (jnp.arange(0, dim, 2, dtype=jnp.float32) / dim))
    omega_full = jnp.concatenate([omega_half, omega_half])                       # (D,)
    phase = jnp.concatenate([jnp.zeros(dim // 2, jnp.float32),
                             jnp.full((dim // 2,), jnp.pi / 2, jnp.float32)])    # (D,)

    # Deterministic synthetic weights (PyTorch-like uniform fan-in init).
    key = jax.random.PRNGKey(seed)
    k1, k2, k3, k4 = jax.random.split(key, 4)
    lim = 1.0 / jnp.sqrt(dim)
    w1 = jax.random.uniform(k1, (dim, dim), jnp.float32, -lim, lim)
    b1 = jax.random.uniform(k2, (dim,), jnp.float32, -lim, lim)
    w2 = jax.random.uniform(k3, (dim, cond_dim), jnp.float32, -lim, lim)
    b2 = jax.random.uniform(k4, (cond_dim,), jnp.float32, -lim, lim)

    # Pack W1, W2 and the four small vectors into ONE lane/sublane-aligned slab
    # -> a single DMA for all parameters.
    col_w2 = _round_up(dim, 128)          # W2 column offset (128-lane aligned)
    row_consts = _round_up(dim, 8)        # consts row offset (8-sublane aligned)
    n_cols = col_w2 + _round_up(cond_dim, 128)
    n_rows = row_consts + 8
    slab = jnp.zeros((n_rows, n_cols), jnp.float32)
    slab = slab.at[0:dim, 0:dim].set(w1)
    slab = slab.at[0:dim, col_w2:col_w2 + cond_dim].set(w2)
    slab = slab.at[row_consts, 0:dim].set(omega_full)
    slab = slab.at[row_consts + 1, 0:dim].set(phase)
    slab = slab.at[row_consts + 2, 0:dim].set(b1)
    slab = slab.at[row_consts + 3, 0:cond_dim].set(b2)

    return dict(slab=slab, dim=dim, cond_dim=cond_dim,
                col_w2=col_w2, row_consts=row_consts,
                # kept only for the pure-JAX reference:
                omega_half=omega_half, w1=w1, b1=b1, w2=w2, b2=b2)


def scalar_conditioner(scalar: jax.Array, params: dict,
                       tile_b: int | None = None) -> jax.Array:
    """scalar: (B,) or (B, 1)  ->  (B, cond_dim)"""
    B = scalar.shape[0]
    assert scalar.size == B, "scalar must have one value per batch element"
    scalar2d = scalar.reshape(B, 1).astype(jnp.float32)

    dim, cond_dim = params["dim"], params["cond_dim"]
    slab = params["slab"]

    # Batch tile: multiple of 8 sublanes, capped at 4096 rows (2 MiB f32 out
    # tile; double-buffered 4 MiB) so it fits v7x's 32 MiB scoped-VMEM default.
    # Raise per-call on v5e/v6e (128 MiB VMEM) for better grid-step amortization.
    if tile_b is None:
        tile_b = min(_round_up(B, 8), 4096)
    tile_b = _round_up(tile_b, 8)
    num_tiles = -(-B // tile_b)
    b_padded = num_tiles * tile_b
    if b_padded != B:
        scalar2d = jnp.pad(scalar2d, ((0, b_padded - B), (0, 0)))

    kernel = functools.partial(
        _scalar_conditioner_kernel,
        dim=dim, cond_dim=cond_dim,
        col_w2=params["col_w2"], row_consts=params["row_consts"])

    out = pl.pallas_call(
        kernel,
        out_shape=jax.ShapeDtypeStruct((b_padded, cond_dim), jnp.float32),
        grid=(num_tiles,),
        in_specs=[
            pl.BlockSpec((tile_b, 1), lambda i: (i, 0)),          # scalar tile
            pl.BlockSpec(slab.shape, lambda i: (0, 0)),           # resident params (DMA'd once)
        ],
        out_specs=pl.BlockSpec((tile_b, cond_dim), lambda i: (i, 0)),
        compiler_params=pltpu.CompilerParams(
            dimension_semantics=("parallel",)),                   # shard batch across TCs (v7x)
    )(scalar2d, slab)

    return out[:B] if b_padded != B else out


def _reference(scalar, params):
    # Pure-JAX reference mirroring the PyTorch module (concat(sin, cos) form).
    B = scalar.shape[0]
    s = scalar.reshape(B, 1).astype(jnp.float32)
    freqs = s * params["omega_half"].reshape(1, -1)
    emb = jnp.concatenate([jnp.sin(freqs), jnp.cos(freqs)], axis=-1)
    h = _gelu_exact(emb @ params["w1"] + params["b1"].reshape(1, -1))
    return _gelu_exact(h @ params["w2"] + params["b2"].reshape(1, -1))


if __name__ == "__main__":
    dim = 32
    cond_dim = dim * 4          # default cond_dim = 4 * dim  (= 128, lane-dense)
    batch = 8

    params = make_params(dim, cond_dim, seed=0)
    key = jax.random.PRNGKey(0)
    scalar = jax.random.uniform(key, (batch, 1), jnp.float32, 0.0, 10.0)

    out = scalar_conditioner(scalar, params)
    out = jax.block_until_ready(out)

    ref = _reference(scalar, params)
    assert out.shape == (batch, cond_dim)
    assert jnp.allclose(out, ref, atol=2e-5, rtol=2e-5), "mismatch vs reference"
    print("KERNEL_OK")
</pallas_src>

<mosaic_0001>
module attributes {stable_mosaic.version = 11 : i64} {
  func.func @_scalar_conditioner_kernel(%arg0: i32, %arg1: memref<8x1xf32, #tpu.memory_space<vmem>>, %arg2: memref<40x256xf32, #tpu.memory_space<vmem>>, %arg3: memref<8x128xf32, #tpu.memory_space<vmem>>) attributes {dimension_semantics = [#tpu.dimension_semantics<parallel>], iteration_bounds = array<i64: 1>, scalar_prefetch = 0 : i64, scratch_operands = 0 : i64, tpu.core_type = #tpu.core_type<tc>, window_params = [{transform_indices = @transform_0, window_bounds = array<i64: 8, 1>}, {pipeline_mode = #tpu.pipeline_mode<synchronous>, transform_indices = @transform_1, window_bounds = array<i64: 40, 256>}, {transform_indices = @transform_2, window_bounds = array<i64: 8, 128>}]} {
    %c0 = arith.constant 0 : index
    %c0_0 = arith.constant 0 : index
    %0 = vector.load %arg2[%c0, %c0_0] : memref<40x256xf32, #tpu.memory_space<vmem>>, vector<32x32xf32>
    %c0_1 = arith.constant 0 : index
    %c128 = arith.constant 128 : index
    %1 = vector.load %arg2[%c0_1, %c128] : memref<40x256xf32, #tpu.memory_space<vmem>>, vector<32x128xf32>
    %c32 = arith.constant 32 : index
    %c0_2 = arith.constant 0 : index
    %2 = vector.load %arg2[%c32, %c0_2] : memref<40x256xf32, #tpu.memory_space<vmem>>, vector<1x32xf32>
    %c33 = arith.constant 33 : index
    %c0_3 = arith.constant 0 : index
    %3 = vector.load %arg2[%c33, %c0_3] : memref<40x256xf32, #tpu.memory_space<vmem>>, vector<1x32xf32>
    %c34 = arith.constant 34 : index
    %c0_4 = arith.constant 0 : index
    %4 = vector.load %arg2[%c34, %c0_4] : memref<40x256xf32, #tpu.memory_space<vmem>>, vector<1x32xf32>
    %c35 = arith.constant 35 : index
    %c0_5 = arith.constant 0 : index
    %5 = vector.load %arg2[%c35, %c0_5] : memref<40x256xf32, #tpu.memory_space<vmem>>, vector<1x128xf32>
    %c0_6 = arith.constant 0 : index
    %c0_7 = arith.constant 0 : index
    %6 = vector.load %arg1[%c0_6, %c0_7] : memref<8x1xf32, #tpu.memory_space<vmem>>, vector<8x1xf32>
    %7 = vector.broadcast %6 : vector<8x1xf32> to vector<8x32xf32>
    %8 = vector.broadcast %2 : vector<1x32xf32> to vector<8x32xf32>
    %9 = arith.mulf %7, %8 : vector<8x32xf32>
    %10 = vector.broadcast %3 : vector<1x32xf32> to vector<8x32xf32>
    %11 = arith.addf %9, %10 : vector<8x32xf32>
    %12 = math.sin %11 : vector<8x32xf32>
    %cst = arith.constant dense<0.000000e+00> : vector<8x32xf32>
    %13 = tpu.matmul %12, %0, %cst {dimension_numbers = #tpu.dot_dimension_numbers<[1], [0], [0], [1], [0, 0, 1, 1], [], []>} : vector<8x32xf32>, vector<32x32xf32>, vector<8x32xf32> -> vector<8x32xf32>
    %14 = vector.broadcast %4 : vector<1x32xf32> to vector<8x32xf32>
    %15 = arith.addf %13, %14 : vector<8x32xf32>
    %cst_8 = arith.constant 5.000000e-01 : f32
    %16 = vector.broadcast %cst_8 : f32 to vector<8x32xf32>
    %17 = arith.mulf %15, %16 : vector<8x32xf32>
    %cst_9 = arith.constant 2.000000e+00 : f32
    %18 = math.sqrt %cst_9 : f32
    %cst_10 = arith.constant 1.000000e+00 : f32
    %19 = arith.divf %cst_10, %18 : f32
    %20 = vector.broadcast %19 : f32 to vector<8x32xf32>
    %21 = arith.mulf %15, %20 : vector<8x32xf32>
    %22 = math.erf %21 : vector<8x32xf32>
    %cst_11 = arith.constant 1.000000e+00 : f32
    %23 = vector.broadcast %cst_11 : f32 to vector<8x32xf32>
    %24 = arith.addf %23, %22 : vector<8x32xf32>
    %25 = arith.mulf %17, %24 : vector<8x32xf32>
    %cst_12 = arith.constant dense<0.000000e+00> : vector<8x128xf32>
    %26 = tpu.matmul %25, %1, %cst_12 {dimension_numbers = #tpu.dot_dimension_numbers<[1], [0], [0], [1], [0, 0, 1, 1], [], []>} : vector<8x32xf32>, vector<32x128xf32>, vector<8x128xf32> -> vector<8x128xf32>
    %27 = vector.broadcast %5 : vector<1x128xf32> to vector<8x128xf32>
    %28 = arith.addf %26, %27 : vector<8x128xf32>
    %cst_13 = arith.constant 5.000000e-01 : f32
    %29 = vector.broadcast %cst_13 : f32 to vector<8x128xf32>
    %30 = arith.mulf %28, %29 : vector<8x128xf32>
    %cst_14 = arith.constant 2.000000e+00 : f32
    %31 = math.sqrt %cst_14 : f32
    %cst_15 = arith.constant 1.000000e+00 : f32
    %32 = arith.divf %cst_15, %31 : f32
    %33 = vector.broadcast %32 : f32 to vector<8x128xf32>
    %34 = arith.mulf %28, %33 : vector<8x128xf32>
    %35 = math.erf %34 : vector<8x128xf32>
    %cst_16 = arith.constant 1.000000e+00 : f32
    %36 = vector.broadcast %cst_16 : f32 to vector<8x128xf32>
    %37 = arith.addf %36, %35 : vector<8x128xf32>
    %38 = arith.mulf %30, %37 : vector<8x128xf32>
    %c0_17 = arith.constant 0 : index
    %c0_18 = arith.constant 0 : index
    %39 = vector.load %arg3[%c0_17, %c0_18] : memref<8x128xf32, #tpu.memory_space<vmem>>, vector<8x128xf32>
    tpu.vector_store %arg3[%c0_17, %c0_18], %38 {strides = array<i32>} : memref<8x128xf32, #tpu.memory_space<vmem>>, vector<8x128xf32>,
    return
  }
  func.func @transform_0(%arg0: i32) -> (i32, i32) {
    %c0_i32 = arith.constant 0 : i32
    %c0_i32_0 = arith.constant 0 : i32
    return %arg0, %c0_i32 : i32, i32
  }
  func.func @transform_1(%arg0: i32) -> (i32, i32) {
    %c0_i32 = arith.constant 0 : i32
    %c0_i32_0 = arith.constant 0 : i32
    %c0_i32_1 = arith.constant 0 : i32
    return %c0_i32, %c0_i32_0 : i32, i32
  }
  func.func @transform_2(%arg0: i32) -> (i32, i32) {
    %c0_i32 = arith.constant 0 : i32
    %c0_i32_0 = arith.constant 0 : i32
    return %arg0, %c0_i32 : i32, i32
  }
}

</mosaic_0001>

<llo_original>
// kernel: tpu_custom_call.1
$region0: #{tpu_custom_call.1}
  #allocation0 [shape = 'u32[]', space=smem, size = 0x4, offset = 0x4, fixed_abs, tag = 'smem constant byte address 0x4 - core index']
  #allocation1 [shape = 'u32[72,128]{1,0:T(1,128)}', space=vmem, size = 0x9000, scoped, tag = 'internal scratch']
  %s0 = inlined_call_operand.vmem [shape: f32[8,1], index: 0, kind: input, shape index: {}]
  %s1 = inlined_call_operand.hbm [shape: f32[40,256], index: 1, kind: input, shape index: {}]
  %s2 = inlined_call_operand.hbm [shape: f32[8,128], index: 2, kind: output, shape index: {}]
  %s3 = sld [smem:[#allocation0]]
  $region22: #{tpu_custom_call.1} parent=0
    _
  %s5 = ssub.s32 1, %s3
  %s6 = scalar_select 0, %s5, %s3
  $region1: #{tpu_custom_call.1} parent=0
    #allocation2 [shape = 'u8[40960]{0}', space=vmem, size = 0xa000, scoped, tag = 'input window, operand 1, single buffered']
    #allocation3 [shape = 's32[1]{0}', space=sflag, size = 0x4, scoped, tag = 'scoped memory for tpu_custom_call.1']
    #allocation4 [shape = 's32[1]{0}', space=sflag, size = 0x4, scoped, tag = 'scoped memory for tpu_custom_call.1']
    #allocation5 [shape = 'u8[4096]{0}', space=vmem, size = 0x1000, scoped, tag = 'output window, operand 0, single buffered']
    %7 = vsyncpa [#allocation3], 0
    %8 = vsyncpa [#allocation4], 0
    // Predicated region
    $region2: #{tpu_custom_call.1} parent=1 // pred_check
      _
    $region3: #{tpu_custom_call.1} parent=1 // pred_check_branch
      %10 = sbr.rel (0) target = $region5
    $region4: #{tpu_custom_call.1} parent=1 // pred_region
      _
    $region5: #{tpu_custom_call.1} parent=1 // pred_fallthru
      _
    // Predicated region
    $region6: #{tpu_custom_call.1} parent=1 // pred_check
      _
    $region7: #{tpu_custom_call.1} parent=1 // pred_check_branch
      %12 = sbr.rel (0) target = $region9
    $region8: #{tpu_custom_call.1} parent=1 // pred_region
      %14 = vsyncadd [#allocation3], 0
      %s15 = sshll.u32 %s1, 4
      %s16 = int_to_ptr.hbm [resolvable:$true] %s15
      %s17 = sshll.u32 [#allocation2], 4
      %s18 = int_to_ptr.vmem [resolvable:$true] %s17
      %23 = dma.hbm_to_vmem [thread:$0]  %s16, 1280, %s18, [#allocation3], 256, 256, 16
    $region9: #{tpu_custom_call.1} parent=1 // pred_fallthru
      _
    // Predicated region
    $region10: #{tpu_custom_call.1} parent=1 // pred_check
      _
    $region11: #{tpu_custom_call.1} parent=1 // pred_check_branch
      %25 = sbr.rel (0) target = $region13
    $region12: #{tpu_custom_call.1} parent=1 // pred_region
      %27 = dma.done [#allocation3], 1280
    $region13: #{tpu_custom_call.1} parent=1 // pred_fallthru
      _
    %v28 = vld [vmem:[#allocation2] sm:$0xff]
    %v29 = vld [vmem:[#allocation2 + $0x10] sm:$0xff]
    %v30 = vld [vmem:[#allocation2 + $0x20] sm:$0xff]
    %v31 = vld [vmem:[#allocation2 + $0x30] sm:$0xff]
    %v32 = vld [vmem:[#allocation2 + $0x8] sm:$0xff]
    %v33 = vld [vmem:[#allocation2 + $0x18] sm:$0xff]
    %v34 = vld [vmem:[#allocation2 + $0x28] sm:$0xff]
    %v35 = vld [vmem:[#allocation2 + $0x38] sm:$0xff]
    %v36 = vld [vmem:[#allocation2 + $0x40] ss:$0 sm:$0xff]
    %v37 = vld [vmem:[#allocation2 + $0x41] ss:$0 sm:$0xff]
    %v38 = vld [vmem:[#allocation2 + $0x42] ss:$0 sm:$0xff]
    %v39 = vld [vmem:[#allocation2 + $0x43] ss:$0 sm:$0xff]
    %v40 = vld [vmem:[%s0] sm:$0xff]
    %42 = vset.pattern.permute.xlu0 0
    %43 = vperm.xlu0 %42, %v40
    %v44 = vpop.permute.xlu0 %43
    %v46 = vmul.f32 %v44, %v36
    %v47 = vadd.f32 %v46, %v37
    %v48 = vand.u32 2147483647, %v47
    %vm49 = vcmp.le.f32.partialorder %v48, 0.7853982
    %vm50 = vcmp.lt.s32.totalorder %v47, 0
    %v51 = vand.u32 %v47, 2139095040
    %v52 = vshrl.u32 %v51, 23
    %v53 = vsub.s32 %v52, 127
    %v54 = vand.u32 2147483647, %v47
    %v55 = vand.u32 %v54, 8388607
    %v56 = vor.u32 %v55, 8388608
    %v57 = vsub.s32 0, %v56
    %v58 = vadd.s32 %v53, 1
    %vm59 = vcmp.gt.s32.totalorder %v58, 0
    %v60 = vsel %vm59, %v58, 0
    %v61 = vshrl.u32 %v60, 5
    %v62 = vand.u32 %v60, 31
    %v63 = vsub.s32 32, %v62
    %v64 = vshrl.u32 683565275, %v63
    %v65 = vshll.u32 683565275, %v62
    %v66 = vshrl.u32 2475754826, %v63
    %v67 = vor.u32 %v65, %v66
    %v68 = vshll.u32 2475754826, %v62
    %v69 = vshrl.u32 2131351028, %v63
    %v70 = vor.u32 %v68, %v69
    %v71 = vshll.u32 2131351028, %v62
    %v72 = vshrl.u32 2102212464, %v63
    %v73 = vor.u32 %v71, %v72
    %v74 = vshll.u32 2102212464, %v62
    %v75 = vshrl.u32 920167782, %v63
    %v76 = vor.u32 %v74, %v75
    %v77 = vshll.u32 920167782, %v62
    %v78 = vshrl.u32 1326507024, %v63
    %v79 = vor.u32 %v77, %v78
    %vm80 = vcmp.lt.s32.totalorder %v61, 1
    %vm81 = vcmp.lt.s32.totalorder %v61, 2
    %vm82 = vcmp.lt.s32.totalorder %v61, 3
    %vm83 = vcmp.lt.s32.totalorder %v61, 4
    %v84 = vsel %vm80, %v64, %v67
    %v85 = vsel %vm83, %v73, 2102212464
    %v86 = vsel %vm82, %v70, %v85
    %v87 = vsel %vm81, %v84, %v86
    %v88 = vsel %vm80, %v67, %v70
    %v89 = vsel %vm83, %v76, 920167782
    %v90 = vsel %vm82, %v73, %v89
    %v91 = vsel %vm81, %v88, %v90
    %v92 = vsel %vm80, %v70, %v73
    %v93 = vsel %vm83, %v79, 1326507024
    %v94 = vsel %vm82, %v76, %v93
    %v95 = vsel %vm81, %v92, %v94
    %v96 = vshll.u32 %v56, 8
    %v97 = vand.u32 %v96, 65535
    %v98 = vshrl.u32 %v96, 16
    %v99 = vand.u32 %v95, 65535
    %v100 = vshrl.u32 %v95, 16
    %v101 = vmul.u32 %v97, %v99
    %v102 = vmul.u32 %v97, %v100
    %v103 = vmul.u32 %v98, %v99
    %v104 = vmul.u32 %v98, %v100
    %v105 = vshll.u32 %v102, 16
    %v106 = vshrl.u32 %v102, 16
    %v107 = vshll.u32 %v103, 16
    %v108 = vshrl.u32 %v103, 16
    %vm109 = vc.u32 %v101, %v105
    %v110 = vsel %vm109, 1, 0
    %v111 = vadd.s32 %v101, %v105
    %v112 = vadd.s32 %v104, %v110
    %vm113 = vc.u32 %v111, %v107
    %v114 = vsel %vm113, 1, 0
    %v115 = vadd.s32 %v111, %v107
    %v116 = vadd.s32 %v112, %v114
    %v117 = vadd.s32 %v116, %v106
    %v118 = vadd.s32 %v117, %v108
    %v119 = vand.u32 %v96, 65535
    %v120 = vshrl.u32 %v96, 16
    %v121 = vand.u32 %v91, 65535
    %v122 = vshrl.u32 %v91, 16
    %v123 = vmul.u32 %v119, %v121
    %v124 = vmul.u32 %v119, %v122
    %v125 = vmul.u32 %v120, %v121
    %v126 = vmul.u32 %v120, %v122
    %v127 = vshll.u32 %v124, 16
    %v128 = vshrl.u32 %v124, 16
    %v129 = vshll.u32 %v125, 16
    %v130 = vshrl.u32 %v125, 16
    %vm131 = vc.u32 %v123, %v127
    %v132 = vsel %vm131, 1, 0
    %v133 = vadd.s32 %v123, %v127
    %v134 = vadd.s32 %v126, %v132
    %vm135 = vc.u32 %v133, %v129
    %v136 = vsel %vm135, 1, 0
    %v137 = vadd.s32 %v133, %v129
    %v138 = vadd.s32 %v134, %v136
    %v139 = vadd.s32 %v138, %v128
    %v140 = vadd.s32 %v139, %v130
    %v141 = vmul.u32 %v96, %v87
    %v142 = vadd.s32 %v118, %v137
    %vm143 = vc.u32 %v118, %v137
    %v144 = vadd.s32 %v140, 1
    %v145 = vsel %vm143, %v144, %v140
    %v146 = vadd.s32 %v141, %v145
    %v147 = vadd.s32 %v146, 536870912
    %v148 = vshrl.u32 %v147, 30
    %v149 = vshll.u32 %v148, 30
    %v150 = vsub.s32 %v146, %v149
    %vm151 = vcmp.lt.s32.totalorder %v150, 0
    %v152 = vsub.s32 0, %v150
    %v153 = vsel %vm151, %v152, %v150
    %v154 = vclz %v153
    %v155 = vsub.s32 %v154, 2
    %vm156 = vcmp.gt.s32.totalorder 0, %v155
    %v157 = vsel %vm156, 0, %v155
    %v158 = vsub.s32 32, %v157
    %v159 = vshll.u32 %v150, %v157
    %v160 = vshrl.u32 %v142, %v158
    %v161 = vor.u32 %v159, %v160
    %v162 = vsub.s32 4294967266, %v157
    %v163 = vadd.s32 %v162, 127
    %v164 = vshll.u32 %v163, 23
    %v165 = vor.u32 4788187, %v164
    %v166 = vand.u32 2147483647, %v165
    %v168 = vcvt.s32.f32 %v161
    %v169 = vmul.f32 %v168, %v166
    %v170 = vxor.u32 %v169, 2147483648
    %v171 = vsel %vm50, %v170, %v169
    %v172 = vsub.s32 4, %v148
    %v173 = vsel %vm50, %v172, %v148
    %v174 = vsel %vm49, %v47, %v171
    %v175 = vsel %vm49, 0, %v173
    %v176 = vmul.f32 %v174, %v174
    %v177 = vmul.f32 %v176, -0.001358992
    %v178 = vadd.f32 %v177, 0.041655596
    %v179 = vmul.f32 %v176, %v178
    %v180 = vadd.f32 %v179, -0.4999988
    %v181 = vmul.f32 %v176, %v180
    %v182 = vadd.f32 1.0, %v181
    %v183 = vmul.f32 %v174, %v174
    %v184 = vmul.f32 %v183, -0.00019511016
    %v185 = vadd.f32 %v184, 0.008332121
    %v186 = vmul.f32 %v183, %v185
    %v187 = vadd.f32 %v186, -0.16666654
    %v188 = vmul.f32 %v183, %v187
    %v189 = vadd.f32 %v188, 1.0
    %v190 = vmul.f32 %v189, %v174
    %vm191 = vweird.f32 %v47
    %v192 = vadd.s32 %v175, 3
    %v193 = vand.u32 %v192, 3
    %vm194 = vcmp.lt.s32.totalorder %v193, 2
    %vm195 = vcmp.eq.s32.totalorder %v193, 0
    %v196 = vxor.u32 %v190, 2147483648
    %v197 = vsel %vm195, %v182, %v196
    %vm198 = vcmp.eq.s32.totalorder %v193, 2
    %v199 = vxor.u32 %v182, 2147483648
    %v200 = vsel %vm198, %v199, %v190
    %v201 = vsel %vm194, %v197, %v200
    %v202 = vsel %vm191, nan, %v201
    %vm203 = vcmask 261120
    %v205 = vsel %vm203, %v202, 0
    %207 = vmatpush.msra.mxu0 0.0
    %208 = vmatpush.msra.mxu0 0.0
    %209 = vmatpush.msra.mxu0 0.0
    %210 = vmatpush.msra.mxu0 0.0
    %211 = vmatpush.msra.mxu0 0.0
    %212 = vmatpush.msra.mxu0 0.0
    %213 = vmatpush.msra.mxu0 0.0
    %214 = vmatpush.msra.mxu0 0.0
    %215 = vmatpush.msra.mxu0 0.0
    %216 = vmatpush.msra.mxu0 0.0
    %217 = vmatpush.msra.mxu0 0.0
    %218 = vmatpush.msra.mxu0 0.0
    %219 = vmatpush.msra.mxu0 %v31
    %220 = vmatpush.msra.mxu0 %v30
    %221 = vmatpush.msra.mxu0 %v29
    %222 = vmatpush.msra.mxu0 %v28
    %223 = vmatmul.f32.gmra.mxu0 %v205
    %v224 = vpop.f32.mrf.mxu0
    %v225 = vadd.f32 %v38, %v224
    %226 = vdwg.mxu0
    %v227 = vmul.f32 %v225, 0.5
    %v228 = vmul.f32 %v225, 0.70710677
    %v229 = vmul.f32 %v228, %v228
    %v230 = vmin.f32 16.0, %v229
    %v231 = vmul.f32 %v230, 2.1237322e-06
    %v232 = vadd.f32 %v231, 0.00028619796
    %v233 = vmul.f32 %v230, %v232
    %v234 = vadd.f32 %v233, 0.0036580483
    %v235 = vmul.f32 %v230, %v234
    %v236 = vadd.f32 %v235, 0.05243302
    %v237 = vmul.f32 %v230, %v236
    %v238 = vadd.f32 %v237, 0.18741608
    %v239 = vmul.f32 %v230, %v238
    %v240 = vadd.f32 %v239, 1.1283791
    %v241 = vmul.f32 %v228, %v240
    %v242 = vmul.f32 %v230, 3.8918573e-05
    %v243 = vadd.f32 %v242, 0.001143296
    %v244 = vmul.f32 %v230, %v243
    %v245 = vadd.f32 %v244, 0.014752088
    %v246 = vmul.f32 %v230, %v245
    %v247 = vadd.f32 %v246, 0.112945676
    %v248 = vmul.f32 %v230, %v247
    %v249 = vadd.f32 %v248, 0.4994258
    %v250 = vmul.f32 %v230, %v249
    %v251 = vadd.f32 %v250, 1.0
    %v252 = vrcp.pop %v251
    %v253 = vmul.f32 %v251, %v252
    %v254 = vsub.f32 1.0, %v253
    %v255 = vmul.f32 %v252, %v254
    %v256 = vadd.f32 %v252, %v255
    %vm257 = vweird.f32 %v251
    %vm258 = vweird.f32 %v252
    %vm259 = vmor %vm257, %vm258
    %v260 = vsel %vm259, %v252, %v256
    %v261 = vand.u32 2147483647, %v251
    %vm262 = vcmp.eq.f32.partialorder %v261, 8.507059e+37
    %v263 = vand.u32 %v251, 2147483648
    %v264 = vor.u32 1.1754944e-38, %v263
    %v265 = vsel %vm262, %v264, %v260
    %v266 = vmul.f32 %v241, %v265
    %v267 = vmin.f32 %v266, 1.0
    %v268 = vmax.f32 %v267, -1.0
    %v269 = vadd.f32 %v268, 1.0
    %v270 = vmul.f32 %v227, %v269
    %v272 = vsel %vm203, %v270, 0
    %274 = vmatpush.msra.mxu0 0.0
    %275 = vmatpush.msra.mxu0 0.0
    %276 = vmatpush.msra.mxu0 0.0
    %277 = vmatpush.msra.mxu0 0.0
    %278 = vmatpush.msra.mxu0 0.0
    %279 = vmatpush.msra.mxu0 0.0
    %280 = vmatpush.msra.mxu0 0.0
    %281 = vmatpush.msra.mxu0 0.0
    %282 = vmatpush.msra.mxu0 0.0
    %283 = vmatpush.msra.mxu0 0.0
    %284 = vmatpush.msra.mxu0 0.0
    %285 = vmatpush.msra.mxu0 0.0
    %286 = vmatpush.msra.mxu0 %v35
    %287 = vmatpush.msra.mxu0 %v34
    %288 = vmatpush.msra.mxu0 %v33
    %289 = vmatpush.msra.mxu0 %v32
    %290 = vmatmul.f32.gmra.mxu0 %v272
    %v291 = vpop.f32.mrf.mxu0
    %v292 = vadd.f32 %v39, %v291
    %293 = vdwg.mxu0
    %v294 = vmul.f32 %v292, 0.5
    %v295 = vmul.f32 %v292, 0.70710677
    %v296 = vmul.f32 %v295, %v295
    %v297 = vmin.f32 16.0, %v296
    %v298 = vmul.f32 %v297, 2.1237322e-06
    %v299 = vadd.f32 %v298, 0.00028619796
    %v300 = vmul.f32 %v297, %v299
    %v301 = vadd.f32 %v300, 0.0036580483
    %v302 = vmul.f32 %v297, %v301
    %v303 = vadd.f32 %v302, 0.05243302
    %v304 = vmul.f32 %v297, %v303
    %v305 = vadd.f32 %v304, 0.18741608
    %v306 = vmul.f32 %v297, %v305
    %v307 = vadd.f32 %v306, 1.1283791
    %v308 = vmul.f32 %v295, %v307
    %v309 = vmul.f32 %v297, 3.8918573e-05
    %v310 = vadd.f32 %v309, 0.001143296
    %v311 = vmul.f32 %v297, %v310
    %v312 = vadd.f32 %v311, 0.014752088
    %v313 = vmul.f32 %v297, %v312
    %v314 = vadd.f32 %v313, 0.112945676
    %v315 = vmul.f32 %v297, %v314
    %v316 = vadd.f32 %v315, 0.4994258
    %v317 = vmul.f32 %v297, %v316
    %v318 = vadd.f32 %v317, 1.0
    %v319 = vrcp.pop %v318
    %v320 = vmul.f32 %v318, %v319
    %v321 = vsub.f32 1.0, %v320
    %v322 = vmul.f32 %v319, %v321
    %v323 = vadd.f32 %v319, %v322
    %vm324 = vweird.f32 %v318
    %vm325 = vweird.f32 %v319
    %vm326 = vmor %vm324, %vm325
    %v327 = vsel %vm326, %v319, %v323
    %v328 = vand.u32 2147483647, %v318
    %vm329 = vcmp.eq.f32.partialorder %v328, 8.507059e+37
    %v330 = vand.u32 %v318, 2147483648
    %v331 = vor.u32 1.1754944e-38, %v330
    %v332 = vsel %vm329, %v331, %v327
    %v333 = vmul.f32 %v308, %v332
    %v334 = vmin.f32 %v333, 1.0
    %v335 = vmax.f32 %v334, -1.0
    %v336 = vadd.f32 %v335, 1.0
    %v337 = vmul.f32 %v294, %v336
    %338 = vst [vmem:[#allocation5] sm:$0xff] %v337
    // Predicated region
    $region14: #{tpu_custom_call.1} parent=1 // pred_check
      _
    $region15: #{tpu_custom_call.1} parent=1 // pred_check_branch
      %340 = sbr.rel (0) target = $region17
    $region16: #{tpu_custom_call.1} parent=1 // pred_region
      %342 = vsyncadd [#allocation4], 0
      %s344 = sshll.u32 [#allocation5], 4
      %s345 = int_to_ptr.vmem [resolvable:$true] %s344
      %s346 = sshll.u32 %s2, 4
      %s347 = int_to_ptr.hbm [resolvable:$true] %s346
      %349 = dma.vmem_to_hbm [thread:$0]  %s345, 128, %s347, [#allocation4]
    $region17: #{tpu_custom_call.1} parent=1 // pred_fallthru
      _
    // Predicated region
    $region18: #{tpu_custom_call.1} parent=1 // pred_check
      _
    $region19: #{tpu_custom_call.1} parent=1 // pred_check_branch
      %351 = sbr.rel (0) target = $region21
    $region20: #{tpu_custom_call.1} parent=1 // pred_region
      %353 = dma.done [#allocation4], 128
    $region21: #{tpu_custom_call.1} parent=1 // pred_fallthru
      _
    %354 = vsyncpa [#allocation3], 1
    %355 = vsyncpa [#allocation4], 1

</llo_original>
